<compile_context>
chip_gen: v5e
topology: v5e:2x2
jax: 0.10.0
libtpu: 0.0.40
codegen_flags: <defaults>
</compile_context>

<pallas_src>
import math

import jax
import jax.numpy as jnp
from jax.experimental import pallas as pl
from jax.experimental.pallas import tpu as pltpu

_MIB = 1024 * 1024
_LANE_CANDIDATES = (32768, 16384, 8192, 4096, 2048, 1024, 512, 256, 128)


# --------------------------------------------------------------------------
# Kernel: identity copy of one (tile_rows, tile_lanes) block.
# --------------------------------------------------------------------------
def _copy_kernel(x_ref, o_ref):
    o_ref[...] = x_ref[...]


# --------------------------------------------------------------------------
# Host-side (static) helpers.
# --------------------------------------------------------------------------
def _squeezed_shape(shape, dim):
    """Replicates torch.Tensor.squeeze semantics for static shapes."""
    rank = len(shape)
    if dim is None:
        return tuple(s for s in shape if s != 1)
    d = dim if dim >= 0 else dim + rank
    if not (0 <= d < rank):
        raise ValueError(f"dim {dim} out of range for rank {rank}")
    if shape[d] == 1:
        return shape[:d] + shape[d + 1:]
    return tuple(shape)  # torch: squeezing a non-1 dim is a no-op


def _tpu_budget():
    """(target block bytes, vmem limit bytes, #tensorcores) per generation."""
    try:
        kind = jax.devices()[0].device_kind.lower()
    except Exception:  # pragma: no cover - defensive
        kind = ""
    if "v7" in kind:
        # v7x: 64 MiB VMEM/TC and 2 TCs -> keep the double-buffered pipeline
        # (~4x block bytes) under the 32 MiB scoped limit per core.
        return 6 * _MIB, 32 * _MIB, 2
    if "v5" in kind or "v6" in kind:
        # 128 MiB physical VMEM, single TC: larger blocks hide step overhead.
        return 10 * _MIB, 64 * _MIB, 1
    # Unknown backend: conservative numbers that fit every generation.
    return 4 * _MIB, 32 * _MIB, 1


def _sublane_pack(itemsize):
    """Native sublane tile rows: 8 for f32, 16 for bf16, 32 for int8/fp8."""
    return max(8, 32 // max(1, int(itemsize)))


def _choose_lane_width(total, last, pack):
    """Lane width for the flattened 2-D (rows, lane) view.

    Prefers the largest multiple-of-128 divisor of `total` whose row count is
    a multiple of the sublane packing; falls back to the largest multiple-of-
    128 divisor, then to the original last dim / the whole tensor.
    """
    best_div = None
    for n in _LANE_CANDIDATES:
        if total % n == 0:
            if best_div is None:
                best_div = n
            if (total // n) % pack == 0:
                return n
    if best_div is not None:
        return best_div
    if last > 0 and total % last == 0:
        return last
    return total


def _choose_lane_tile(lane, pack, itemsize, target_bytes):
    """Column tile: full extent if it fits, else a multiple-of-128 tile."""
    max_tc = max(128, (target_bytes // (pack * itemsize)) // 128 * 128)
    if lane <= max_tc:
        return lane  # full-extent column block (always legal)
    if lane % 128 == 0:
        tc = max_tc
        while tc >= 128 and lane % tc != 0:
            tc -= 128
        return tc if tc >= 128 else 128
    # Awkward (non multiple-of-128) but huge lane: ragged last column block.
    return max_tc


def _choose_row_tile(rows, tc, pack, itemsize, target_bytes, num_cores):
    """Row tile sized to ~target_bytes, aligned to the dtype's sublane pack."""
    if rows <= pack:
        return rows  # full extent (legal even when < 8 rows)
    tr = (target_bytes // (tc * itemsize)) // pack * pack
    tr = max(pack, min(tr, rows))
    # v7x: a single-block grid leaves one TensorCore idle; force >= 2 row
    # blocks when there is enough work to split.
    if num_cores >= 2 and tr >= rows and rows >= 2 * pack:
        half = -(-rows // 2)
        tr = min(rows, ((half + pack - 1) // pack) * pack)
    return tr


# --------------------------------------------------------------------------
# Public wrapper.
# --------------------------------------------------------------------------
def pallas_squeeze(x, dim=None, materialize=False, target_bytes=None):
    """Squeeze `x` along `dim` (or all size-1 dims if dim is None).

    materialize=False (default): pure metadata reshape, zero HBM traffic.
    materialize=True           : data goes through a tiled Pallas copy kernel.
    target_bytes               : optional override of the per-block byte
                                 budget (mainly for testing the tiled path).
    """
    in_shape = tuple(x.shape)
    out_shape = _squeezed_shape(in_shape, dim)

    total = math.prod(in_shape) if in_shape else 1
    if not materialize or total == 0:
        # Fast path: squeeze is free as a reshape.
        return x.reshape(out_shape)

    itemsize = jnp.dtype(x.dtype).itemsize
    last = in_shape[-1] if in_shape else 1
    pack = _sublane_pack(itemsize)

    budget_bytes, vmem_limit, num_cores = _tpu_budget()
    if target_bytes is not None:
        budget_bytes = int(target_bytes)

    # Lane-dense 2-D view: (rows, lane), lane a multiple of 128 if possible.
    lane = _choose_lane_width(total, last, pack)
    rows = total // lane
    x2 = x.reshape(rows, lane)

    tc = _choose_lane_tile(lane, pack, itemsize, budget_bytes)
    tr = _choose_row_tile(rows, tc, pack, itemsize, budget_bytes, num_cores)
    grid = (pl.cdiv(rows, tr), pl.cdiv(lane, tc))

    y2 = pl.pallas_call(
        _copy_kernel,
        out_shape=jax.ShapeDtypeStruct((rows, lane), x.dtype),
        grid=grid,
        in_specs=[pl.BlockSpec((tr, tc), lambda i, j: (i, j))],
        out_specs=pl.BlockSpec((tr, tc), lambda i, j: (i, j)),
        compiler_params=pltpu.CompilerParams(
            dimension_semantics=("parallel", "parallel"),
            vmem_limit_bytes=vmem_limit,
        ),
        cost_estimate=pl.CostEstimate(
            flops=0, transcendentals=0, bytes_accessed=2 * total * itemsize
        ),
    )(x2)

    return y2.reshape(out_shape)


class Squeeze:
    """Drop-in analogue of the PyTorch module."""

    def __init__(self, dim=None):
        self.dim = dim

    def __call__(self, inputs, materialize=False):
        return pallas_squeeze(inputs, self.dim, materialize=materialize)


if __name__ == "__main__":
    key = jax.random.PRNGKey(0)

    # Primary case: NCHW with singleton channel, squeeze(dim=1) via Pallas copy.
    x = jax.random.normal(key, (2, 1, 16, 16), dtype=jnp.float32)
    y1 = jax.block_until_ready(pallas_squeeze(x, dim=1, materialize=True))
    assert y1.shape == (2, 16, 16), y1.shape
    assert jnp.allclose(y1, x.reshape(2, 16, 16)), "value mismatch (dim=1)"

    # Module-style call; dim=None removes all size-1 dims (metadata fast path).
    sq = Squeeze(dim=None)
    x2 = jax.random.normal(key, (2, 1, 16, 1, 16), dtype=jnp.float32)
    y2 = jax.block_until_ready(sq(x2))
    assert y2.shape == (2, 16, 16), y2.shape
    assert jnp.allclose(y2, x2.reshape(2, 16, 16)), "value mismatch (dim=None)"

    # Squeeze of a non-1 dim is a no-op (torch semantics), materializing path.
    y3 = jax.block_until_ready(pallas_squeeze(x, dim=0, materialize=True))
    assert y3.shape == x.shape, y3.shape
    assert jnp.allclose(y3, x), "value mismatch (no-op squeeze)"

    # bf16 case: exercises the dtype-aware (16,128)-aligned tiling.
    x4 = jax.random.normal(key, (4, 1, 64, 128), dtype=jnp.bfloat16)
    y4 = jax.block_until_ready(pallas_squeeze(x4, dim=1, materialize=True))
    assert y4.shape == (4, 64, 128), y4.shape
    assert jnp.array_equal(y4, x4.reshape(4, 64, 128)), "value mismatch (bf16)"

    # Small target_bytes override: forces a multi-block (lane-tiled) grid.
    x5 = jax.random.normal(key, (2, 1, 128, 256), dtype=jnp.float32)
    y5 = jax.block_until_ready(
        pallas_squeeze(x5, dim=1, materialize=True, target_bytes=32 * 1024))
    assert y5.shape == (2, 128, 256), y5.shape
    assert jnp.allclose(y5, x5.reshape(2, 128, 256)), "value mismatch (tiled)"

    # Awkward shape (total not a multiple of 128): guarded fallback path.
    x6 = jax.random.normal(key, (3, 1, 5, 7), dtype=jnp.float32)
    y6 = jax.block_until_ready(pallas_squeeze(x6, dim=1, materialize=True))
    assert y6.shape == (3, 5, 7), y6.shape
    assert jnp.allclose(y6, x6.reshape(3, 5, 7)), "value mismatch (awkward)"

    print("KERNEL_OK")
</pallas_src>

<mosaic_0001>
module attributes {stable_mosaic.version = 11 : i64} {
  func.func @_copy_kernel(%arg0: i32, %arg1: i32, %arg2: memref<1x512xf32, #tpu.memory_space<vmem>>, %arg3: memref<1x512xf32, #tpu.memory_space<vmem>>) attributes {dimension_semantics = [#tpu.dimension_semantics<parallel>, #tpu.dimension_semantics<parallel>], iteration_bounds = array<i64: 1, 1>, scalar_prefetch = 0 : i64, scratch_operands = 0 : i64, tpu.core_type = #tpu.core_type<tc>, window_params = [{transform_indices = @transform_0, window_bounds = array<i64: 1, 512>}, {transform_indices = @transform_1, window_bounds = array<i64: 1, 512>}]} {
    %c0 = arith.constant 0 : index
    %c0_0 = arith.constant 0 : index
    %0 = vector.load %arg2[%c0, %c0_0] : memref<1x512xf32, #tpu.memory_space<vmem>>, vector<1x512xf32>
    %c0_1 = arith.constant 0 : index
    %c0_2 = arith.constant 0 : index
    %1 = vector.load %arg3[%c0_1, %c0_2] : memref<1x512xf32, #tpu.memory_space<vmem>>, vector<1x512xf32>
    tpu.vector_store %arg3[%c0_1, %c0_2], %0 {strides = array<i32>} : memref<1x512xf32, #tpu.memory_space<vmem>>, vector<1x512xf32>,
    return
  }
  func.func @transform_0(%arg0: i32, %arg1: i32) -> (i32, i32) {
    %c0_i32 = arith.constant 0 : i32
    return %arg0, %arg1 : i32, i32
  }
  func.func @transform_1(%arg0: i32, %arg1: i32) -> (i32, i32) {
    %c0_i32 = arith.constant 0 : i32
    return %arg0, %arg1 : i32, i32
  }
}

</mosaic_0001>

<llo_original>
// kernel: tpu_custom_call.1
$region0: #{tpu_custom_call.1}
  #allocation0 [shape = 'u32[]', space=smem, size = 0x4, offset = 0x4, fixed_abs, tag = 'smem constant byte address 0x4 - core index']
  #allocation1 [shape = 'u32[72,128]{1,0:T(1,128)}', space=vmem, size = 0x9000, scoped, tag = 'internal scratch']
  %s0 = inlined_call_operand.hbm [shape: f32[1,512], index: 0, kind: input, shape index: {}]
  %s1 = inlined_call_operand.hbm [shape: f32[1,512], index: 1, kind: output, shape index: {}]
  %s2 = sld [smem:[#allocation0]]
  $region18: #{tpu_custom_call.1} parent=0
    _
  %s4 = ssub.s32 1, %s2
  %s5 = scalar_select 0, %s4, %s2
  $region1: #{tpu_custom_call.1} parent=0
    #allocation2 [shape = 'u8[2048]{0}', space=vmem, size = 0x800, scoped, tag = 'input window, operand 0, single buffered']
    #allocation3 [shape = 's32[1]{0}', space=sflag, size = 0x4, scoped, tag = 'scoped memory for tpu_custom_call.1']
    #allocation4 [shape = 's32[1]{0}', space=sflag, size = 0x4, scoped, tag = 'scoped memory for tpu_custom_call.1']
    #allocation5 [shape = 'u8[2048]{0}', space=vmem, size = 0x800, scoped, tag = 'output window, operand 0, single buffered']
    %6 = vsyncpa [#allocation3], 0
    %7 = vsyncpa [#allocation4], 0
    // Predicated region
    $region2: #{tpu_custom_call.1} parent=1 // pred_check
      _
    $region3: #{tpu_custom_call.1} parent=1 // pred_check_branch
      %9 = sbr.rel (0) target = $region5
    $region4: #{tpu_custom_call.1} parent=1 // pred_region
      %11 = vsyncadd [#allocation3], 0
      %s13 = sshll.u32 %s0, 4
      %s14 = int_to_ptr.hbm [resolvable:$true] %s13
      %s15 = sshll.u32 [#allocation2], 4
      %s16 = int_to_ptr.vmem [resolvable:$true] %s15
      %18 = dma.hbm_to_vmem [thread:$0]  %s14, 64, %s16, [#allocation3]
    $region5: #{tpu_custom_call.1} parent=1 // pred_fallthru
      _
    // Predicated region
    $region6: #{tpu_custom_call.1} parent=1 // pred_check
      _
    $region7: #{tpu_custom_call.1} parent=1 // pred_check_branch
      %20 = sbr.rel (0) target = $region9
    $region8: #{tpu_custom_call.1} parent=1 // pred_region
      %22 = dma.done [#allocation3], 64
    $region9: #{tpu_custom_call.1} parent=1 // pred_fallthru
      _
    %v23 = vld [vmem:[#allocation2] sm:$0xf]
    %v24 = vlaneseq
    %vm25 = vcmp.ge.s32.totalorder %v24, 0
    %vm26 = vcmp.lt.s32.totalorder %v24, 512
    %vm27 = vmand %vm25, %vm26
    %28 = vst.msk [vmem:[#allocation5] sm:$0xf] %vm27, %v23
    // Predicated region
    $region10: #{tpu_custom_call.1} parent=1 // pred_check
      _
    $region11: #{tpu_custom_call.1} parent=1 // pred_check_branch
      %30 = sbr.rel (0) target = $region13
    $region12: #{tpu_custom_call.1} parent=1 // pred_region
      %32 = vsyncadd [#allocation4], 0
      %s34 = sshll.u32 [#allocation5], 4
      %s35 = int_to_ptr.vmem [resolvable:$true] %s34
      %s36 = sshll.u32 %s1, 4
      %s37 = int_to_ptr.hbm [resolvable:$true] %s36
      %39 = dma.vmem_to_hbm [thread:$0]  %s35, 64, %s37, [#allocation4]
    $region13: #{tpu_custom_call.1} parent=1 // pred_fallthru
      _
    // Predicated region
    $region14: #{tpu_custom_call.1} parent=1 // pred_check
      _
    $region15: #{tpu_custom_call.1} parent=1 // pred_check_branch
      %41 = sbr.rel (0) target = $region17
    $region16: #{tpu_custom_call.1} parent=1 // pred_region
      %43 = dma.done [#allocation4], 64
    $region17: #{tpu_custom_call.1} parent=1 // pred_fallthru
      _
    %44 = vsyncpa [#allocation3], 1
    %45 = vsyncpa [#allocation4], 1

</llo_original>
